<compile_context>
chip_gen: v5e
topology: v5e:2x2
jax: 0.10.0
libtpu: 0.0.40
codegen_flags: <defaults>
</compile_context>

<pallas_src>
import functools

import jax
import jax.numpy as jnp
from jax.experimental import pallas as pl
from jax.experimental.pallas import tpu as pltpu


def _round_up(x, m):
    return (x + m - 1) // m * m


def _score_bias_kernel(h_ref, r_ref, cand_t_ref, hb_ref, tb_ref, out_ref):
    # h_ref, r_ref : (B, Dp)  f32   -- ent_embed[src], rel_embed[rel] (D padded)
    # cand_t_ref   : (Dp, TC) bf16  -- transposed candidate/entity tile (K, N)
    # hb_ref       : (B, 1)   f32   -- head_bias_embed[src]
    # tb_ref       : (1, TC)  f32   -- tail_bias_embed[candidate] tile
    # out_ref      : (B, TC)  f32   -- scores, lane-dense (candidates on lanes)
    hr = (h_ref[...] * r_ref[...]).astype(cand_t_ref.dtype)       # VPU f32, cast for MXU
    score = jax.lax.dot_general(                                   # MXU, f32 accumulate
        hr, cand_t_ref[...],
        dimension_numbers=(((1,), (0,)), ((), ())),
        preferred_element_type=jnp.float32)
    out_ref[...] = (score + hb_ref[...] + tb_ref[...]).astype(out_ref.dtype)


def prepare_params(params, *, lane=128):
    """One-time weight preparation (done once per model, reused across calls).

    - pads the embedding dim D up to a multiple of 128 with zero columns
      (zero K-columns contribute 0 to the dot -> numerics unchanged),
    - stores the entity table transposed (Dp, E) in bf16 for the kernel's
      candidate stream (canonical MXU (K, N) rhs layout, half the HBM bytes).
    """
    ent_w, rel_w, hb_w, tb_w = params
    D = ent_w.shape[1]
    Dp = _round_up(D, lane)
    pad = Dp - D
    ent_p = jnp.pad(ent_w, ((0, 0), (0, pad))) if pad else ent_w        # (E, Dp) f32
    rel_p = jnp.pad(rel_w, ((0, 0), (0, pad))) if pad else rel_w        # (R, Dp) f32
    ent_t_bf16 = ent_p.T.astype(jnp.bfloat16)                           # (Dp, E) bf16
    return dict(ent_f32=ent_p, rel_f32=rel_p, ent_t_bf16=ent_t_bf16,
                hb=hb_w, tb_row=tb_w[:, 0])


@functools.partial(jax.jit, static_argnames=("tile_c",))
def _forward_impl(src, rel, candidate, prep, *, tile_c):
    ent_t = prep["ent_t_bf16"]                     # (Dp, E) bf16
    Dp, _ = ent_t.shape
    src = src.astype(jnp.int32)
    rel = rel.astype(jnp.int32)

    # Tiny per-row gathers (B rows each) hoisted to plain JAX.
    h = prep["ent_f32"][src]                       # (B, Dp) f32
    r = prep["rel_f32"][rel]                       # (B, Dp) f32
    hb = prep["hb"][src]                           # (B, 1)  f32

    if candidate is None:
        cand_t = ent_t                             # (Dp, E) -- streamed directly
        tb = prep["tb_row"]                        # (E,)
    else:
        cand = candidate.astype(jnp.int32)
        # TODO(synk): replace this XLA gather with an in-kernel DMA row-gather
        # (scalar-prefetched indices + memory_space=pl.ANY) to halve HBM traffic.
        cand_t = jnp.take(ent_t, cand, axis=1)     # (Dp, C) bf16
        tb = prep["tb_row"][cand]                  # (C,)

    B = h.shape[0]
    C = cand_t.shape[1]

    # Fixed, 128-aligned candidate tile; pad C up so every block is full-size.
    tc = min(_round_up(tile_c, 128), _round_up(C, 128))
    Cp = _round_up(C, tc)
    if Cp != C:
        cand_t = jnp.pad(cand_t, ((0, 0), (0, Cp - C)))   # zero cand rows -> score 0
        tb = jnp.pad(tb, (0, Cp - C))                      # zero bias in padding
    tb2 = tb[None, :].astype(jnp.float32)                  # (1, Cp)
    nblk = Cp // tc

    # Explicit VMEM budget: double-buffered cand tile (bf16) + out tile + h/r/biases.
    tile_bytes = (2 * tc * Dp * 2          # candidate tile, 2 buffers, bf16
                  + 2 * B * tc * 4         # output tile, 2 buffers, f32
                  + 2 * 2 * B * Dp * 4     # h and r, 2 buffers each, f32
                  + 2 * (B + tc) * 4)      # biases
    vmem_limit = int(min(max(2 * tile_bytes, 16 * 1024 * 1024), 48 * 1024 * 1024))

    out = pl.pallas_call(
        _score_bias_kernel,
        out_shape=jax.ShapeDtypeStruct((B, Cp), jnp.float32),
        grid_spec=pltpu.PrefetchScalarGridSpec(
            num_scalar_prefetch=0,
            grid=(nblk,),
            in_specs=[
                pl.BlockSpec((B, Dp), lambda c: (0, 0)),     # h
                pl.BlockSpec((B, Dp), lambda c: (0, 0)),     # r
                pl.BlockSpec((Dp, tc), lambda c: (0, c)),    # candidate embeds (K, N)
                pl.BlockSpec((B, 1), lambda c: (0, 0)),      # head bias
                pl.BlockSpec((1, tc), lambda c: (0, c)),     # tail bias
            ],
            out_specs=pl.BlockSpec((B, tc), lambda c: (0, c)),
        ),
        compiler_params=pltpu.CompilerParams(
            dimension_semantics=("parallel",),
            vmem_limit_bytes=vmem_limit),
    )(h, r, cand_t, hb, tb2)

    return out[:, :C] if Cp != C else out


def basic_forward(src, rel, candidate, prep, *, tile_c=1024):
    """Pallas equivalent of BasicFunction.forward (eval-mode dropout)."""
    return _forward_impl(src, rel, candidate, prep, tile_c=tile_c)


def _reference(src, rel, candidate, params):
    """Pure-JAX reference mirroring the kernel's bf16-in / f32-accumulate dot."""
    ent_w, rel_w, hb_w, tb_w = params
    h = ent_w[src]
    r = rel_w[rel]
    if candidate is None:
        cand = ent_w
        tb = tb_w[:, 0][None, :]
    else:
        cand = ent_w[candidate]
        tb = tb_w[candidate][:, 0][None, :]
    hr = (h * r).astype(jnp.bfloat16)
    score = jnp.dot(hr, cand.astype(jnp.bfloat16).T,
                    preferred_element_type=jnp.float32)
    return score + hb_w[src] + tb


if __name__ == "__main__":
    key = jax.random.PRNGKey(0)
    B, C = 2, 128
    entityNum, relationNum, hidden_dim = 32, 8, 32
    init_size = 0.001

    k1, k2, k3, k4, k5, k6 = jax.random.split(key, 6)
    ent_w = init_size * jax.random.normal(k1, (entityNum, hidden_dim), jnp.float32)
    rel_w = init_size * jax.random.normal(k2, (2 * relationNum, hidden_dim), jnp.float32)
    # Module init sets both bias tables to zeros; small random values are used
    # here so the bias-add path is actually exercised by the check.
    hb_w = 0.01 * jax.random.normal(k3, (entityNum, 1), jnp.float32)
    tb_w = 0.01 * jax.random.normal(k4, (entityNum, 1), jnp.float32)
    params = (ent_w, rel_w, hb_w, tb_w)
    prep = prepare_params(params)

    src = jax.random.randint(k5, (B,), 0, entityNum)
    rel = jax.random.randint(k6, (B,), 0, 2 * relationNum)
    candidate = jax.random.randint(jax.random.PRNGKey(1), (C,), 0, entityNum)

    # Candidate path.
    out = jax.block_until_ready(basic_forward(src, rel, candidate, prep))
    ref = _reference(src, rel, candidate, params)
    assert out.shape == (B, C)
    assert bool(jnp.allclose(out, ref, atol=1e-6, rtol=1e-3)), "candidate path mismatch"

    # candidate=None path (score against all entities, padded + sliced internally).
    out_all = jax.block_until_ready(basic_forward(src, rel, None, prep))
    ref_all = _reference(src, rel, None, params)
    assert out_all.shape == (B, entityNum)
    assert bool(jnp.allclose(out_all, ref_all, atol=1e-6, rtol=1e-3)), "all-entities mismatch"

    # Sanity vs full-f32 math (bias adds exact, bf16 score error is tiny here).
    h = ent_w[src]; r = rel_w[rel]
    ref_f32 = (h * r) @ ent_w.T + hb_w[src] + tb_w[:, 0][None, :]
    assert bool(jnp.allclose(out_all, ref_f32, atol=1e-5, rtol=5e-3))

    print("KERNEL_OK")
</pallas_src>

<mosaic_0001>
module attributes {stable_mosaic.version = 11 : i64} {
  func.func @_score_bias_kernel(%arg0: i32, %arg1: memref<2x128xf32, #tpu.memory_space<vmem>>, %arg2: memref<2x128xf32, #tpu.memory_space<vmem>>, %arg3: memref<128x128xbf16, #tpu.memory_space<vmem>>, %arg4: memref<2x1xf32, #tpu.memory_space<vmem>>, %arg5: memref<1x128xf32, #tpu.memory_space<vmem>>, %arg6: memref<2x128xf32, #tpu.memory_space<vmem>>) attributes {dimension_semantics = [#tpu.dimension_semantics<parallel>], iteration_bounds = array<i64: 1>, scalar_prefetch = 0 : i64, scratch_operands = 0 : i64, tpu.core_type = #tpu.core_type<tc>, window_params = [{pipeline_mode = #tpu.pipeline_mode<synchronous>, transform_indices = @transform_0, window_bounds = array<i64: 2, 128>}, {pipeline_mode = #tpu.pipeline_mode<synchronous>, transform_indices = @transform_1, window_bounds = array<i64: 2, 128>}, {transform_indices = @transform_2, window_bounds = array<i64: 128, 128>}, {pipeline_mode = #tpu.pipeline_mode<synchronous>, transform_indices = @transform_3, window_bounds = array<i64: 2, 1>}, {transform_indices = @transform_4, window_bounds = array<i64: 1, 128>}, {transform_indices = @transform_5, window_bounds = array<i64: 2, 128>}]} {
    %c0 = arith.constant 0 : index
    %c0_0 = arith.constant 0 : index
    %0 = vector.load %arg1[%c0, %c0_0] : memref<2x128xf32, #tpu.memory_space<vmem>>, vector<2x128xf32>
    %c0_1 = arith.constant 0 : index
    %c0_2 = arith.constant 0 : index
    %1 = vector.load %arg2[%c0_1, %c0_2] : memref<2x128xf32, #tpu.memory_space<vmem>>, vector<2x128xf32>
    %2 = arith.mulf %0, %1 : vector<2x128xf32>
    %3 = arith.truncf %2 : vector<2x128xf32> to vector<2x128xbf16>
    %c0_3 = arith.constant 0 : index
    %c0_4 = arith.constant 0 : index
    %4 = vector.load %arg3[%c0_3, %c0_4] : memref<128x128xbf16, #tpu.memory_space<vmem>>, vector<128x128xbf16>
    %cst = arith.constant dense<0.000000e+00> : vector<2x128xf32>
    %5 = tpu.matmul %3, %4, %cst {dimension_numbers = #tpu.dot_dimension_numbers<[1], [0], [0], [1], [0, 0, 1, 1], [], []>} : vector<2x128xbf16>, vector<128x128xbf16>, vector<2x128xf32> -> vector<2x128xf32>
    %c0_5 = arith.constant 0 : index
    %c0_6 = arith.constant 0 : index
    %6 = vector.load %arg4[%c0_5, %c0_6] : memref<2x1xf32, #tpu.memory_space<vmem>>, vector<2x1xf32>
    %7 = vector.broadcast %6 : vector<2x1xf32> to vector<2x128xf32>
    %8 = arith.addf %5, %7 : vector<2x128xf32>
    %c0_7 = arith.constant 0 : index
    %c0_8 = arith.constant 0 : index
    %9 = vector.load %arg5[%c0_7, %c0_8] : memref<1x128xf32, #tpu.memory_space<vmem>>, vector<1x128xf32>
    %10 = vector.broadcast %9 : vector<1x128xf32> to vector<2x128xf32>
    %11 = arith.addf %8, %10 : vector<2x128xf32>
    %c0_9 = arith.constant 0 : index
    %c0_10 = arith.constant 0 : index
    %12 = vector.load %arg6[%c0_9, %c0_10] : memref<2x128xf32, #tpu.memory_space<vmem>>, vector<2x128xf32>
    tpu.vector_store %arg6[%c0_9, %c0_10], %11 {strides = array<i32>} : memref<2x128xf32, #tpu.memory_space<vmem>>, vector<2x128xf32>,
    return
  }
  func.func @transform_0(%arg0: i32) -> (i32, i32) {
    %c0_i32 = arith.constant 0 : i32
    %c0_i32_0 = arith.constant 0 : i32
    %c0_i32_1 = arith.constant 0 : i32
    return %c0_i32, %c0_i32_0 : i32, i32
  }
  func.func @transform_1(%arg0: i32) -> (i32, i32) {
    %c0_i32 = arith.constant 0 : i32
    %c0_i32_0 = arith.constant 0 : i32
    %c0_i32_1 = arith.constant 0 : i32
    return %c0_i32, %c0_i32_0 : i32, i32
  }
  func.func @transform_2(%arg0: i32) -> (i32, i32) {
    %c0_i32 = arith.constant 0 : i32
    %c0_i32_0 = arith.constant 0 : i32
    return %c0_i32, %arg0 : i32, i32
  }
  func.func @transform_3(%arg0: i32) -> (i32, i32) {
    %c0_i32 = arith.constant 0 : i32
    %c0_i32_0 = arith.constant 0 : i32
    %c0_i32_1 = arith.constant 0 : i32
    return %c0_i32, %c0_i32_0 : i32, i32
  }
  func.func @transform_4(%arg0: i32) -> (i32, i32) {
    %c0_i32 = arith.constant 0 : i32
    %c0_i32_0 = arith.constant 0 : i32
    return %c0_i32, %arg0 : i32, i32
  }
  func.func @transform_5(%arg0: i32) -> (i32, i32) {
    %c0_i32 = arith.constant 0 : i32
    %c0_i32_0 = arith.constant 0 : i32
    return %c0_i32, %arg0 : i32, i32
  }
}

</mosaic_0001>

<llo_original>
// kernel: _forward_impl.1
$region0: #{_forward_impl.1}
  #allocation0 [shape = 'u32[]', space=smem, size = 0x4, offset = 0x4, fixed_abs, tag = 'smem constant byte address 0x4 - core index']
  #allocation1 [shape = 'u32[72,128]{1,0:T(1,128)}', space=vmem, size = 0x9000, scoped, tag = 'internal scratch']
  %s0 = inlined_call_operand.vmem [shape: f32[2,128], index: 0, kind: input, shape index: {}]
  %s1 = inlined_call_operand.vmem [shape: f32[2,128], index: 1, kind: input, shape index: {}]
  %s2 = inlined_call_operand.vmem [shape: bf16[128,128], index: 2, kind: input, shape index: {}]
  %s3 = inlined_call_operand.vmem [shape: f32[2,1], index: 3, kind: input, shape index: {}]
  %s4 = inlined_call_operand.vmem [shape: f32[1,128], index: 4, kind: input, shape index: {}]
  %s5 = inlined_call_operand.hbm [shape: f32[2,128], index: 5, kind: output, shape index: {}]
  %s6 = sld [smem:[#allocation0]]
  $region30: #{_forward_impl.1} parent=0
    _
  %s8 = ssub.s32 1, %s6
  %s9 = scalar_select 0, %s8, %s6
  $region1: #{_forward_impl.1} parent=0
    #allocation2 [shape = 'u8[1024]{0}', space=vmem, size = 0x400, scoped, tag = 'output window, operand 0, single buffered']
    #allocation3 [shape = 's32[1]{0}', space=sflag, size = 0x4, scoped, tag = 'scoped memory for _forward_impl.1']
    %10 = vsyncpa [#allocation3], 0
    // Predicated region
    $region2: #{_forward_impl.1} parent=1 // pred_check
      _
    $region3: #{_forward_impl.1} parent=1 // pred_check_branch
      %12 = sbr.rel (0) target = $region5
    $region4: #{_forward_impl.1} parent=1 // pred_region
      _
    $region5: #{_forward_impl.1} parent=1 // pred_fallthru
      _
    // Predicated region
    $region6: #{_forward_impl.1} parent=1 // pred_check
      _
    $region7: #{_forward_impl.1} parent=1 // pred_check_branch
      %14 = sbr.rel (0) target = $region9
    $region8: #{_forward_impl.1} parent=1 // pred_region
      _
    $region9: #{_forward_impl.1} parent=1 // pred_fallthru
      _
    // Predicated region
    $region10: #{_forward_impl.1} parent=1 // pred_check
      _
    $region11: #{_forward_impl.1} parent=1 // pred_check_branch
      %16 = sbr.rel (0) target = $region13
    $region12: #{_forward_impl.1} parent=1 // pred_region
      _
    $region13: #{_forward_impl.1} parent=1 // pred_fallthru
      _
    // Predicated region
    $region14: #{_forward_impl.1} parent=1 // pred_check
      _
    $region15: #{_forward_impl.1} parent=1 // pred_check_branch
      %18 = sbr.rel (0) target = $region17
    $region16: #{_forward_impl.1} parent=1 // pred_region
      _
    $region17: #{_forward_impl.1} parent=1 // pred_fallthru
      _
    // Predicated region
    $region18: #{_forward_impl.1} parent=1 // pred_check
      _
    $region19: #{_forward_impl.1} parent=1 // pred_check_branch
      %20 = sbr.rel (0) target = $region21
    $region20: #{_forward_impl.1} parent=1 // pred_region
      _
    $region21: #{_forward_impl.1} parent=1 // pred_fallthru
      _
    %v21 = vld [vmem:[%s0] sm:$0x3]
    %v22 = vld [vmem:[%s1] sm:$0x3]
    %v23 = vmul.f32 %v21, %v22
    %v24 = vpack.c.bf16 %v23, %v23
    %v25 = vld [vmem:[%s2] sm:$0xf]
    %v26 = vld [vmem:[%s2 + $0x4] sm:$0xf]
    %v27 = vld [vmem:[%s2 + $0x8] sm:$0xf]
    %v28 = vld [vmem:[%s2 + $0xc] sm:$0xf]
    %v29 = vld [vmem:[%s2 + $0x10] sm:$0xf]
    %v30 = vld [vmem:[%s2 + $0x14] sm:$0xf]
    %v31 = vld [vmem:[%s2 + $0x18] sm:$0xf]
    %v32 = vld [vmem:[%s2 + $0x1c] sm:$0xf]
    %v33 = vld [vmem:[%s2 + $0x20] sm:$0xf]
    %v34 = vld [vmem:[%s2 + $0x24] sm:$0xf]
    %v35 = vld [vmem:[%s2 + $0x28] sm:$0xf]
    %v36 = vld [vmem:[%s2 + $0x2c] sm:$0xf]
    %v37 = vld [vmem:[%s2 + $0x30] sm:$0xf]
    %v38 = vld [vmem:[%s2 + $0x34] sm:$0xf]
    %v39 = vld [vmem:[%s2 + $0x38] sm:$0xf]
    %v40 = vld [vmem:[%s2 + $0x3c] sm:$0xf]
    %v41 = vld [vmem:[%s3] sm:$0x3]
    %43 = vset.pattern.permute.xlu0 0
    %44 = vperm.xlu0 %43, %v41
    %v45 = vpop.permute.xlu0 %44
    %v63 = vunpack.c.l.b16 %v25
    %v64 = vunpack.c.l.b16 %v26
    %v65 = vunpack.c.l.b16 %v27
    %v66 = vunpack.c.l.b16 %v28
    %v67 = vunpack.c.l.b16 %v29
    %v68 = vunpack.c.l.b16 %v30
    %v69 = vunpack.c.l.b16 %v31
    %v70 = vunpack.c.l.b16 %v32
    %v71 = vunpack.c.l.b16 %v33
    %v72 = vunpack.c.l.b16 %v34
    %v73 = vunpack.c.l.b16 %v35
    %v74 = vunpack.c.l.b16 %v36
    %v75 = vunpack.c.l.b16 %v37
    %v76 = vunpack.c.l.b16 %v38
    %v77 = vunpack.c.l.b16 %v39
    %v78 = vunpack.c.l.b16 %v40
    %v79 = vpack.c.b16 %v64, %v63
    %v80 = vpack.c.b16 %v66, %v65
    %v81 = vpack.c.b16 %v68, %v67
    %v82 = vpack.c.b16 %v70, %v69
    %v83 = vpack.c.b16 %v72, %v71
    %v84 = vpack.c.b16 %v74, %v73
    %v85 = vpack.c.b16 %v76, %v75
    %v86 = vpack.c.b16 %v78, %v77
    %95 = vmatpush.bf16.msra.mxu0 %v86
    %96 = vmatpush.bf16.msra.mxu0 %v85
    %97 = vmatpush.bf16.msra.mxu0 %v84
    %98 = vmatpush.bf16.msra.mxu0 %v83
    %99 = vmatpush.bf16.msra.mxu0 %v82
    %100 = vmatpush.bf16.msra.mxu0 %v81
    %101 = vmatpush.bf16.msra.mxu0 %v80
    %102 = vmatpush.bf16.msra.mxu0 %v79
    %103 = vmatmul.bf16.gmra.mxu0 %v24
    %v104 = vpop.f32.mrf.mxu0
    %v105 = vadd.f32 %v45, %v104
    %v106 = vpop.f32.mrf.mxu0
    %107 = vdwg.mxu0
    %v108 = vld [vmem:[%s4] sm:$0x1]
    %v110 = vperm.slane %v108, 0
    %v112 = vadd.f32 %v105, %v110
    %113 = vst [vmem:[#allocation2] sm:$0x3] %v112
    // Predicated region
    $region22: #{_forward_impl.1} parent=1 // pred_check
      _
    $region23: #{_forward_impl.1} parent=1 // pred_check_branch
      %115 = sbr.rel (0) target = $region25
    $region24: #{_forward_impl.1} parent=1 // pred_region
      %117 = vsyncadd [#allocation3], 0
      %s119 = sshll.u32 [#allocation2], 4
      %s120 = int_to_ptr.vmem [resolvable:$true] %s119
      %s121 = sshll.u32 %s5, 4
      %s122 = int_to_ptr.hbm [resolvable:$true] %s121
      %124 = dma.vmem_to_hbm [thread:$0]  %s120, 32, %s122, [#allocation3]
    $region25: #{_forward_impl.1} parent=1 // pred_fallthru
      _
    // Predicated region
    $region26: #{_forward_impl.1} parent=1 // pred_check
      _
    $region27: #{_forward_impl.1} parent=1 // pred_check_branch
      %126 = sbr.rel (0) target = $region29
    $region28: #{_forward_impl.1} parent=1 // pred_region
      %128 = dma.done [#allocation3], 32
    $region29: #{_forward_impl.1} parent=1 // pred_fallthru
      _
    %129 = vsyncpa [#allocation3], 1

</llo_original>
